<compile_context>
chip_gen: v5e
topology: v5e:2x2
jax: 0.10.0
libtpu: 0.0.40
codegen_flags: <defaults>
</compile_context>

<pallas_src>
import jax
import jax.numpy as jnp
from jax.experimental import pallas as pl
from jax.experimental.pallas import tpu as pltpu


def _make_rnn_kernel(T, B, D, H, O):
    """Kernel closure over static shapes.  Gate layout inside: [i, f, o, g]."""
    G = 4 * H          # gate width (lane-dense: 128 for H=32)
    XR = T * B         # rows of the flattened input block

    def kernel(mx_ref, fp_ref, y_ref):
        # ---- hoist everything out of the recurrence (loaded exactly once) ---
        x_bf = mx_ref[0:XR, :]                  # (T*B, G) bf16, lanes >= D are 0
        wih  = mx_ref[XR:XR + G, :]             # (G, G)   bf16, rows  >= D are 0
        whh  = mx_ref[XR + G:XR + G + H, :]     # (H, G)   bf16
        wlin = fp_ref[0:H, :]                   # (H, G)   f32, lanes >= O are 0
        b    = fp_ref[H:H + 1, :]               # (1, G)   f32 (b_ih + b_hh)
        blin = fp_ref[H + 1:H + 2, :]           # (1, G)   f32, lanes >= O are 0

        # ---- prologue: hoisted input projection, one MXU push, kept in vregs
        gx = jnp.dot(x_bf, wih, preferred_element_type=jnp.float32) + b  # (T*B, G)

        # ---- recurrence: only h @ W_hh + gate math on the serial path -------
        h = jnp.zeros((B, H), jnp.float32)      # torch init_hidden(): zeros
        c = jnp.zeros((B, H), jnp.float32)
        H3 = 3 * H
        for t in range(T):                      # fully static unroll, static slices
            gates = gx[t * B:(t + 1) * B, :] + jnp.dot(
                h.astype(jnp.bfloat16), whh, preferred_element_type=jnp.float32)
            s = jax.nn.sigmoid(gates[:, :H3])   # one EUP dispatch for [i | f | o]
            g_g = jnp.tanh(gates[:, H3:])       # one EUP dispatch for g
            c = s[:, H:2 * H] * c + s[:, :H] * g_g
            h = s[:, 2 * H:H3] * jnp.tanh(c)

        # ---- epilogue: linear(lstm_out[-1]); pad lanes stay zero -------------
        y_ref[...] = jnp.dot(h, wlin, preferred_element_type=jnp.float32) + blin

    return kernel


def rnn_model_forward(x, w_ih, w_hh, b, w_lin, b_lin):
    """x: (T, B, D) f32; weights pre-transposed, gate order [i,f,g,o].

    Returns y_pred[:, 0] -> shape (B,), matching RnnModel.forward.
    """
    T, B, D = x.shape
    H = w_hh.shape[0]
    O = w_lin.shape[1]
    G = 4 * H
    assert D <= G and G % 128 == 0, "packing assumes lane-dense 4H and D <= 4H"

    # Reorder gate blocks [i, f, g, o] -> [i, f, o, g] so sigmoid is contiguous.
    def reorder(a):
        return jnp.concatenate([a[..., :2 * H], a[..., 3 * H:], a[..., 2 * H:3 * H]],
                               axis=-1)

    w_ih_r, w_hh_r, b_r = reorder(w_ih), reorder(w_hh), reorder(b)

    # Slab A (bf16, MXU operands): [x padded to G lanes ; W_ih padded to G rows ; W_hh]
    x2d = x.reshape(T * B, D)
    x_pad = jnp.zeros((T * B, G), jnp.float32).at[:, :D].set(x2d)
    wih_pad = jnp.zeros((G, G), jnp.float32).at[:D, :].set(w_ih_r)
    slab_mxu = jnp.concatenate([x_pad, wih_pad, w_hh_r], axis=0).astype(jnp.bfloat16)

    # Slab B (f32, VPU operands): [W_lin padded to G lanes ; b ; b_lin padded]
    wlin_pad = jnp.zeros((H, G), jnp.float32).at[:, :O].set(w_lin)
    blin_pad = jnp.zeros((1, G), jnp.float32).at[:, :O].set(b_lin)
    slab_f32 = jnp.concatenate([wlin_pad, b_r, blin_pad], axis=0)

    XR = T * B
    cost = pl.CostEstimate(
        flops=2 * T * B * G * G + 2 * T * B * H * G + 2 * B * H * G,
        transcendentals=10 * T * B * H,             # sigmoid ~ exp + recip
        bytes_accessed=2 * (XR + G + H) * G + 4 * (H + 2) * G + 4 * B * G,
    )

    y_full = pl.pallas_call(
        _make_rnn_kernel(T, B, D, H, O),
        out_shape=jax.ShapeDtypeStruct((B, G), jnp.float32),
        grid_spec=pltpu.PrefetchScalarGridSpec(
            num_scalar_prefetch=0,
            grid=(1,),                               # single invocation; loop in-kernel
            in_specs=[
                pl.BlockSpec((XR + G + H, G), lambda i: (0, 0)),   # bf16 MXU slab
                pl.BlockSpec((H + 2, G), lambda i: (0, 0)),        # f32 slab
            ],
            out_specs=pl.BlockSpec((B, G), lambda i: (0, 0)),
        ),
        compiler_params=pltpu.CompilerParams(
            dimension_semantics=("arbitrary",)),
        cost_estimate=cost,
    )(slab_mxu, slab_f32)

    # forward() returns y_pred[:, 0]
    return y_full[:, 0]


if __name__ == "__main__":
    # Small shapes consistent with the module
    T, B, D, H, O = 8, 2, 8, 32, 4   # seq, batch, input_dim, hidden_dim, output_dim

    key = jax.random.PRNGKey(0)
    ks = jax.random.split(key, 7)
    bound = 1.0 / jnp.sqrt(H)        # PyTorch-style uniform(-1/sqrt(H), 1/sqrt(H))

    x = jax.random.normal(ks[0], (T, B, D), dtype=jnp.float32)

    # LSTM params (stored pre-transposed for x @ W).  Gate order [i, f, g, o].
    w_ih = jax.random.uniform(ks[1], (D, 4 * H), jnp.float32, -bound, bound)
    w_hh = jax.random.uniform(ks[2], (H, 4 * H), jnp.float32, -bound, bound)
    b_ih = jax.random.uniform(ks[3], (1, 4 * H), jnp.float32, -bound, bound)
    b_hh = jax.random.uniform(ks[4], (1, 4 * H), jnp.float32, -bound, bound)
    b = b_ih + b_hh

    # Linear(hidden_dim, output_dim)
    w_lin = jax.random.uniform(ks[5], (H, O), jnp.float32, -bound, bound)
    b_lin = jax.random.uniform(ks[6], (1, O), jnp.float32, -bound, bound)

    y = rnn_model_forward(x, w_ih, w_hh, b, w_lin, b_lin)
    jax.block_until_ready(y)
    assert y.shape == (B,)

    # pure-JAX f32 reference of the same math (gate order [i, f, g, o])
    def ref(x):
        h = jnp.zeros((B, H), jnp.float32)
        c = jnp.zeros((B, H), jnp.float32)
        for t in range(T):
            g = x[t] @ w_ih + h @ w_hh + b
            i_g = jax.nn.sigmoid(g[:, 0:H])
            f_g = jax.nn.sigmoid(g[:, H:2 * H])
            g_g = jnp.tanh(g[:, 2 * H:3 * H])
            o_g = jax.nn.sigmoid(g[:, 3 * H:4 * H])
            c = f_g * c + i_g * g_g
            h = o_g * jnp.tanh(c)
        return (h @ w_lin + b_lin)[:, 0]

    # bf16 MXU operands in the kernel -> loosen tolerance vs the f32 reference
    assert jnp.allclose(y, ref(x), atol=2e-2, rtol=2e-2)
    print("KERNEL_OK")
</pallas_src>

<mosaic_0001>
module attributes {stable_mosaic.version = 11 : i64} {
  func.func @kernel(%arg0: i32, %arg1: memref<176x128xbf16, #tpu.memory_space<vmem>>, %arg2: memref<34x128xf32, #tpu.memory_space<vmem>>, %arg3: memref<2x128xf32, #tpu.memory_space<vmem>>) attributes {dimension_semantics = [#tpu.dimension_semantics<arbitrary>], iteration_bounds = array<i64: 1>, scalar_prefetch = 0 : i64, scratch_operands = 0 : i64, tpu.core_type = #tpu.core_type<tc>, window_params = [{pipeline_mode = #tpu.pipeline_mode<synchronous>, transform_indices = @transform_0, window_bounds = array<i64: 176, 128>}, {pipeline_mode = #tpu.pipeline_mode<synchronous>, transform_indices = @transform_1, window_bounds = array<i64: 34, 128>}, {pipeline_mode = #tpu.pipeline_mode<synchronous>, transform_indices = @transform_2, window_bounds = array<i64: 2, 128>}]} {
    %c0 = arith.constant 0 : index
    %c0_0 = arith.constant 0 : index
    %0 = vector.load %arg1[%c0, %c0_0] : memref<176x128xbf16, #tpu.memory_space<vmem>>, vector<16x128xbf16>
    %c16 = arith.constant 16 : index
    %c0_1 = arith.constant 0 : index
    %1 = vector.load %arg1[%c16, %c0_1] : memref<176x128xbf16, #tpu.memory_space<vmem>>, vector<128x128xbf16>
    %c144 = arith.constant 144 : index
    %c0_2 = arith.constant 0 : index
    %2 = vector.load %arg1[%c144, %c0_2] : memref<176x128xbf16, #tpu.memory_space<vmem>>, vector<32x128xbf16>
    %c0_3 = arith.constant 0 : index
    %c0_4 = arith.constant 0 : index
    %3 = vector.load %arg2[%c0_3, %c0_4] : memref<34x128xf32, #tpu.memory_space<vmem>>, vector<32x128xf32>
    %c32 = arith.constant 32 : index
    %c0_5 = arith.constant 0 : index
    %4 = vector.load %arg2[%c32, %c0_5] : memref<34x128xf32, #tpu.memory_space<vmem>>, vector<1x128xf32>
    %c33 = arith.constant 33 : index
    %c0_6 = arith.constant 0 : index
    %5 = vector.load %arg2[%c33, %c0_6] : memref<34x128xf32, #tpu.memory_space<vmem>>, vector<1x128xf32>
    %cst = arith.constant dense<0.000000e+00> : vector<16x128xf32>
    %6 = tpu.matmul %0, %1, %cst {dimension_numbers = #tpu.dot_dimension_numbers<[1], [0], [0], [1], [0, 0, 1, 1], [], []>} : vector<16x128xbf16>, vector<128x128xbf16>, vector<16x128xf32> -> vector<16x128xf32>
    %7 = vector.broadcast %4 : vector<1x128xf32> to vector<16x128xf32>
    %8 = arith.addf %6, %7 : vector<16x128xf32>
    %cst_7 = arith.constant 0.000000e+00 : f32
    %9 = vector.broadcast %cst_7 : f32 to vector<2x32xf32>
    %cst_8 = arith.constant 0.000000e+00 : f32
    %10 = vector.broadcast %cst_8 : f32 to vector<2x32xf32>
    %11 = vector.extract_strided_slice %8 {offsets = [0, 0], sizes = [2, 128], strides = [1, 1]} : vector<16x128xf32> to vector<2x128xf32>
    %12 = arith.truncf %9 : vector<2x32xf32> to vector<2x32xbf16>
    %cst_9 = arith.constant dense<0.000000e+00> : vector<2x128xf32>
    %13 = tpu.matmul %12, %2, %cst_9 {dimension_numbers = #tpu.dot_dimension_numbers<[1], [0], [0], [1], [0, 0, 1, 1], [], []>} : vector<2x32xbf16>, vector<32x128xbf16>, vector<2x128xf32> -> vector<2x128xf32>
    %14 = arith.addf %11, %13 : vector<2x128xf32>
    %15 = vector.extract_strided_slice %14 {offsets = [0, 0], sizes = [2, 96], strides = [1, 1]} : vector<2x128xf32> to vector<2x96xf32>
    %16 = arith.negf %15 : vector<2x96xf32>
    %17 = math.exp %16 : vector<2x96xf32>
    %cst_10 = arith.constant 1.000000e+00 : f32
    %18 = vector.broadcast %cst_10 : f32 to vector<2x96xf32>
    %19 = arith.addf %18, %17 : vector<2x96xf32>
    %20 = arith.divf %18, %19 : vector<2x96xf32>
    %21 = vector.extract_strided_slice %14 {offsets = [0, 96], sizes = [2, 32], strides = [1, 1]} : vector<2x128xf32> to vector<2x32xf32>
    %22 = math.tanh %21 : vector<2x32xf32>
    %23 = vector.extract_strided_slice %20 {offsets = [0, 32], sizes = [2, 32], strides = [1, 1]} : vector<2x96xf32> to vector<2x32xf32>
    %24 = arith.mulf %23, %10 : vector<2x32xf32>
    %25 = vector.extract_strided_slice %20 {offsets = [0, 0], sizes = [2, 32], strides = [1, 1]} : vector<2x96xf32> to vector<2x32xf32>
    %26 = arith.mulf %25, %22 : vector<2x32xf32>
    %27 = arith.addf %24, %26 : vector<2x32xf32>
    %28 = vector.extract_strided_slice %20 {offsets = [0, 64], sizes = [2, 32], strides = [1, 1]} : vector<2x96xf32> to vector<2x32xf32>
    %29 = math.tanh %27 : vector<2x32xf32>
    %30 = arith.mulf %28, %29 : vector<2x32xf32>
    %31 = vector.extract_strided_slice %8 {offsets = [2, 0], sizes = [2, 128], strides = [1, 1]} : vector<16x128xf32> to vector<2x128xf32>
    %32 = arith.truncf %30 : vector<2x32xf32> to vector<2x32xbf16>
    %cst_11 = arith.constant dense<0.000000e+00> : vector<2x128xf32>
    %33 = tpu.matmul %32, %2, %cst_11 {dimension_numbers = #tpu.dot_dimension_numbers<[1], [0], [0], [1], [0, 0, 1, 1], [], []>} : vector<2x32xbf16>, vector<32x128xbf16>, vector<2x128xf32> -> vector<2x128xf32>
    %34 = arith.addf %31, %33 : vector<2x128xf32>
    %35 = vector.extract_strided_slice %34 {offsets = [0, 0], sizes = [2, 96], strides = [1, 1]} : vector<2x128xf32> to vector<2x96xf32>
    %36 = arith.negf %35 : vector<2x96xf32>
    %37 = math.exp %36 : vector<2x96xf32>
    %cst_12 = arith.constant 1.000000e+00 : f32
    %38 = vector.broadcast %cst_12 : f32 to vector<2x96xf32>
    %39 = arith.addf %38, %37 : vector<2x96xf32>
    %40 = arith.divf %38, %39 : vector<2x96xf32>
    %41 = vector.extract_strided_slice %34 {offsets = [0, 96], sizes = [2, 32], strides = [1, 1]} : vector<2x128xf32> to vector<2x32xf32>
    %42 = math.tanh %41 : vector<2x32xf32>
    %43 = vector.extract_strided_slice %40 {offsets = [0, 32], sizes = [2, 32], strides = [1, 1]} : vector<2x96xf32> to vector<2x32xf32>
    %44 = arith.mulf %43, %27 : vector<2x32xf32>
    %45 = vector.extract_strided_slice %40 {offsets = [0, 0], sizes = [2, 32], strides = [1, 1]} : vector<2x96xf32> to vector<2x32xf32>
    %46 = arith.mulf %45, %42 : vector<2x32xf32>
    %47 = arith.addf %44, %46 : vector<2x32xf32>
    %48 = vector.extract_strided_slice %40 {offsets = [0, 64], sizes = [2, 32], strides = [1, 1]} : vector<2x96xf32> to vector<2x32xf32>
    %49 = math.tanh %47 : vector<2x32xf32>
    %50 = arith.mulf %48, %49 : vector<2x32xf32>
    %51 = vector.extract_strided_slice %8 {offsets = [4, 0], sizes = [2, 128], strides = [1, 1]} : vector<16x128xf32> to vector<2x128xf32>
    %52 = arith.truncf %50 : vector<2x32xf32> to vector<2x32xbf16>
    %cst_13 = arith.constant dense<0.000000e+00> : vector<2x128xf32>
    %53 = tpu.matmul %52, %2, %cst_13 {dimension_numbers = #tpu.dot_dimension_numbers<[1], [0], [0], [1], [0, 0, 1, 1], [], []>} : vector<2x32xbf16>, vector<32x128xbf16>, vector<2x128xf32> -> vector<2x128xf32>
    %54 = arith.addf %51, %53 : vector<2x128xf32>
    %55 = vector.extract_strided_slice %54 {offsets = [0, 0], sizes = [2, 96], strides = [1, 1]} : vector<2x128xf32> to vector<2x96xf32>
    %56 = arith.negf %55 : vector<2x96xf32>
    %57 = math.exp %56 : vector<2x96xf32>
    %cst_14 = arith.constant 1.000000e+00 : f32
    %58 = vector.broadcast %cst_14 : f32 to vector<2x96xf32>
    %59 = arith.addf %58, %57 : vector<2x96xf32>
    %60 = arith.divf %58, %59 : vector<2x96xf32>
    %61 = vector.extract_strided_slice %54 {offsets = [0, 96], sizes = [2, 32], strides = [1, 1]} : vector<2x128xf32> to vector<2x32xf32>
    %62 = math.tanh %61 : vector<2x32xf32>
    %63 = vector.extract_strided_slice %60 {offsets = [0, 32], sizes = [2, 32], strides = [1, 1]} : vector<2x96xf32> to vector<2x32xf32>
    %64 = arith.mulf %63, %47 : vector<2x32xf32>
    %65 = vector.extract_strided_slice %60 {offsets = [0, 0], sizes = [2, 32], strides = [1, 1]} : vector<2x96xf32> to vector<2x32xf32>
    %66 = arith.mulf %65, %62 : vector<2x32xf32>
    %67 = arith.addf %64, %66 : vector<2x32xf32>
    %68 = vector.extract_strided_slice %60 {offsets = [0, 64], sizes = [2, 32], strides = [1, 1]} : vector<2x96xf32> to vector<2x32xf32>
    %69 = math.tanh %67 : vector<2x32xf32>
    %70 = arith.mulf %68, %69 : vector<2x32xf32>
    %71 = vector.extract_strided_slice %8 {offsets = [6, 0], sizes = [2, 128], strides = [1, 1]} : vector<16x128xf32> to vector<2x128xf32>
    %72 = arith.truncf %70 : vector<2x32xf32> to vector<2x32xbf16>
    %cst_15 = arith.constant dense<0.000000e+00> : vector<2x128xf32>
    %73 = tpu.matmul %72, %2, %cst_15 {dimension_numbers = #tpu.dot_dimension_numbers<[1], [0], [0], [1], [0, 0, 1, 1], [], []>} : vector<2x32xbf16>, vector<32x128xbf16>, vector<2x128xf32> -> vector<2x128xf32>
    %74 = arith.addf %71, %73 : vector<2x128xf32>
    %75 = vector.extract_strided_slice %74 {offsets = [0, 0], sizes = [2, 96], strides = [1, 1]} : vector<2x128xf32> to vector<2x96xf32>
    %76 = arith.negf %75 : vector<2x96xf32>
    %77 = math.exp %76 : vector<2x96xf32>
    %cst_16 = arith.constant 1.000000e+00 : f32
    %78 = vector.broadcast %cst_16 : f32 to vector<2x96xf32>
    %79 = arith.addf %78, %77 : vector<2x96xf32>
    %80 = arith.divf %78, %79 : vector<2x96xf32>
    %81 = vector.extract_strided_slice %74 {offsets = [0, 96], sizes = [2, 32], strides = [1, 1]} : vector<2x128xf32> to vector<2x32xf32>
    %82 = math.tanh %81 : vector<2x32xf32>
    %83 = vector.extract_strided_slice %80 {offsets = [0, 32], sizes = [2, 32], strides = [1, 1]} : vector<2x96xf32> to vector<2x32xf32>
    %84 = arith.mulf %83, %67 : vector<2x32xf32>
    %85 = vector.extract_strided_slice %80 {offsets = [0, 0], sizes = [2, 32], strides = [1, 1]} : vector<2x96xf32> to vector<2x32xf32>
    %86 = arith.mulf %85, %82 : vector<2x32xf32>
    %87 = arith.addf %84, %86 : vector<2x32xf32>
    %88 = vector.extract_strided_slice %80 {offsets = [0, 64], sizes = [2, 32], strides = [1, 1]} : vector<2x96xf32> to vector<2x32xf32>
    %89 = math.tanh %87 : vector<2x32xf32>
    %90 = arith.mulf %88, %89 : vector<2x32xf32>
    %91 = vector.extract_strided_slice %8 {offsets = [8, 0], sizes = [2, 128], strides = [1, 1]} : vector<16x128xf32> to vector<2x128xf32>
    %92 = arith.truncf %90 : vector<2x32xf32> to vector<2x32xbf16>
    %cst_17 = arith.constant dense<0.000000e+00> : vector<2x128xf32>
    %93 = tpu.matmul %92, %2, %cst_17 {dimension_numbers = #tpu.dot_dimension_numbers<[1], [0], [0], [1], [0, 0, 1, 1], [], []>} : vector<2x32xbf16>, vector<32x128xbf16>, vector<2x128xf32> -> vector<2x128xf32>
    %94 = arith.addf %91, %93 : vector<2x128xf32>
    %95 = vector.extract_strided_slice %94 {offsets = [0, 0], sizes = [2, 96], strides = [1, 1]} : vector<2x128xf32> to vector<2x96xf32>
    %96 = arith.negf %95 : vector<2x96xf32>
    %97 = math.exp %96 : vector<2x96xf32>
    %cst_18 = arith.constant 1.000000e+00 : f32
    %98 = vector.broadcast %cst_18 : f32 to vector<2x96xf32>
    %99 = arith.addf %98, %97 : vector<2x96xf32>
    %100 = arith.divf %98, %99 : vector<2x96xf32>
    %101 = vector.extract_strided_slice %94 {offsets = [0, 96], sizes = [2, 32], strides = [1, 1]} : vector<2x128xf32> to vector<2x32xf32>
    %102 = math.tanh %101 : vector<2x32xf32>
    %103 = vector.extract_strided_slice %100 {offsets = [0, 32], sizes = [2, 32], strides = [1, 1]} : vector<2x96xf32> to vector<2x32xf32>
    %104 = arith.mulf %103, %87 : vector<2x32xf32>
    %105 = vector.extract_strided_slice %100 {offsets = [0, 0], sizes = [2, 32], strides = [1, 1]} : vector<2x96xf32> to vector<2x32xf32>
    %106 = arith.mulf %105, %102 : vector<2x32xf32>
    %107 = arith.addf %104, %106 : vector<2x32xf32>
    %108 = vector.extract_strided_slice %100 {offsets = [0, 64], sizes = [2, 32], strides = [1, 1]} : vector<2x96xf32> to vector<2x32xf32>
    %109 = math.tanh %107 : vector<2x32xf32>
    %110 = arith.mulf %108, %109 : vector<2x32xf32>
    %111 = vector.extract_strided_slice %8 {offsets = [10, 0], sizes = [2, 128], strides = [1, 1]} : vector<16x128xf32> to vector<2x128xf32>
    %112 = arith.truncf %110 : vector<2x32xf32> to vector<2x32xbf16>
    %cst_19 = arith.constant dense<0.000000e+00> : vector<2x128xf32>
    %113 = tpu.matmul %112, %2, %cst_19 {dimension_numbers = #tpu.dot_dimension_numbers<[1], [0], [0], [1], [0, 0, 1, 1], [], []>} : vector<2x32xbf16>, vector<32x128xbf16>, vector<2x128xf32> -> vector<2x128xf32>
    %114 = arith.addf %111, %113 : vector<2x128xf32>
    %115 = vector.extract_strided_slice %114 {offsets = [0, 0], sizes = [2, 96], strides = [1, 1]} : vector<2x128xf32> to vector<2x96xf32>
    %116 = arith.negf %115 : vector<2x96xf32>
    %117 = math.exp %116 : vector<2x96xf32>
    %cst_20 = arith.constant 1.000000e+00 : f32
    %118 = vector.broadcast %cst_20 : f32 to vector<2x96xf32>
    %119 = arith.addf %118, %117 : vector<2x96xf32>
    %120 = arith.divf %118, %119 : vector<2x96xf32>
    %121 = vector.extract_strided_slice %114 {offsets = [0, 96], sizes = [2, 32], strides = [1, 1]} : vector<2x128xf32> to vector<2x32xf32>
    %122 = math.tanh %121 : vector<2x32xf32>
    %123 = vector.extract_strided_slice %120 {offsets = [0, 32], sizes = [2, 32], strides = [1, 1]} : vector<2x96xf32> to vector<2x32xf32>
    %124 = arith.mulf %123, %107 : vector<2x32xf32>
    %125 = vector.extract_strided_slice %120 {offsets = [0, 0], sizes = [2, 32], strides = [1, 1]} : vector<2x96xf32> to vector<2x32xf32>
    %126 = arith.mulf %125, %122 : vector<2x32xf32>
    %127 = arith.addf %124, %126 : vector<2x32xf32>
    %128 = vector.extract_strided_slice %120 {offsets = [0, 64], sizes = [2, 32], strides = [1, 1]} : vector<2x96xf32> to vector<2x32xf32>
    %129 = math.tanh %127 : vector<2x32xf32>
    %130 = arith.mulf %128, %129 : vector<2x32xf32>
    %131 = vector.extract_strided_slice %8 {offsets = [12, 0], sizes = [2, 128], strides = [1, 1]} : vector<16x128xf32> to vector<2x128xf32>
    %132 = arith.truncf %130 : vector<2x32xf32> to vector<2x32xbf16>
    %cst_21 = arith.constant dense<0.000000e+00> : vector<2x128xf32>
    %133 = tpu.matmul %132, %2, %cst_21 {dimension_numbers = #tpu.dot_dimension_numbers<[1], [0], [0], [1], [0, 0, 1, 1], [], []>} : vector<2x32xbf16>, vector<32x128xbf16>, vector<2x128xf32> -> vector<2x128xf32>
    %134 = arith.addf %131, %133 : vector<2x128xf32>
    %135 = vector.extract_strided_slice %134 {offsets = [0, 0], sizes = [2, 96], strides = [1, 1]} : vector<2x128xf32> to vector<2x96xf32>
    %136 = arith.negf %135 : vector<2x96xf32>
    %137 = math.exp %136 : vector<2x96xf32>
    %cst_22 = arith.constant 1.000000e+00 : f32
    %138 = vector.broadcast %cst_22 : f32 to vector<2x96xf32>
    %139 = arith.addf %138, %137 : vector<2x96xf32>
    %140 = arith.divf %138, %139 : vector<2x96xf32>
    %141 = vector.extract_strided_slice %134 {offsets = [0, 96], sizes = [2, 32], strides = [1, 1]} : vector<2x128xf32> to vector<2x32xf32>
    %142 = math.tanh %141 : vector<2x32xf32>
    %143 = vector.extract_strided_slice %140 {offsets = [0, 32], sizes = [2, 32], strides = [1, 1]} : vector<2x96xf32> to vector<2x32xf32>
    %144 = arith.mulf %143, %127 : vector<2x32xf32>
    %145 = vector.extract_strided_slice %140 {offsets = [0, 0], sizes = [2, 32], strides = [1, 1]} : vector<2x96xf32> to vector<2x32xf32>
    %146 = arith.mulf %145, %142 : vector<2x32xf32>
    %147 = arith.addf %144, %146 : vector<2x32xf32>
    %148 = vector.extract_strided_slice %140 {offsets = [0, 64], sizes = [2, 32], strides = [1, 1]} : vector<2x96xf32> to vector<2x32xf32>
    %149 = math.tanh %147 : vector<2x32xf32>
    %150 = arith.mulf %148, %149 : vector<2x32xf32>
    %151 = vector.extract_strided_slice %8 {offsets = [14, 0], sizes = [2, 128], strides = [1, 1]} : vector<16x128xf32> to vector<2x128xf32>
    %152 = arith.truncf %150 : vector<2x32xf32> to vector<2x32xbf16>
    %cst_23 = arith.constant dense<0.000000e+00> : vector<2x128xf32>
    %153 = tpu.matmul %152, %2, %cst_23 {dimension_numbers = #tpu.dot_dimension_numbers<[1], [0], [0], [1], [0, 0, 1, 1], [], []>} : vector<2x32xbf16>, vector<32x128xbf16>, vector<2x128xf32> -> vector<2x128xf32>
    %154 = arith.addf %151, %153 : vector<2x128xf32>
    %155 = vector.extract_strided_slice %154 {offsets = [0, 0], sizes = [2, 96], strides = [1, 1]} : vector<2x128xf32> to vector<2x96xf32>
    %156 = arith.negf %155 : vector<2x96xf32>
    %157 = math.exp %156 : vector<2x96xf32>
    %cst_24 = arith.constant 1.000000e+00 : f32
    %158 = vector.broadcast %cst_24 : f32 to vector<2x96xf32>
    %159 = arith.addf %158, %157 : vector<2x96xf32>
    %160 = arith.divf %158, %159 : vector<2x96xf32>
    %161 = vector.extract_strided_slice %154 {offsets = [0, 96], sizes = [2, 32], strides = [1, 1]} : vector<2x128xf32> to vector<2x32xf32>
    %162 = math.tanh %161 : vector<2x32xf32>
    %163 = vector.extract_strided_slice %160 {offsets = [0, 32], sizes = [2, 32], strides = [1, 1]} : vector<2x96xf32> to vector<2x32xf32>
    %164 = arith.mulf %163, %147 : vector<2x32xf32>
    %165 = vector.extract_strided_slice %160 {offsets = [0, 0], sizes = [2, 32], strides = [1, 1]} : vector<2x96xf32> to vector<2x32xf32>
    %166 = arith.mulf %165, %162 : vector<2x32xf32>
    %167 = arith.addf %164, %166 : vector<2x32xf32>
    %168 = vector.extract_strided_slice %160 {offsets = [0, 64], sizes = [2, 32], strides = [1, 1]} : vector<2x96xf32> to vector<2x32xf32>
    %169 = math.tanh %167 : vector<2x32xf32>
    %170 = arith.mulf %168, %169 : vector<2x32xf32>
    %cst_25 = arith.constant dense<0.000000e+00> : vector<2x128xf32>
    %171 = tpu.matmul %170, %3, %cst_25 {dimension_numbers = #tpu.dot_dimension_numbers<[1], [0], [0], [1], [0, 0, 1, 1], [], []>} : vector<2x32xf32>, vector<32x128xf32>, vector<2x128xf32> -> vector<2x128xf32>
    %172 = vector.broadcast %5 : vector<1x128xf32> to vector<2x128xf32>
    %173 = arith.addf %171, %172 : vector<2x128xf32>
    %c0_26 = arith.constant 0 : index
    %c0_27 = arith.constant 0 : index
    %174 = vector.load %arg3[%c0_26, %c0_27] : memref<2x128xf32, #tpu.memory_space<vmem>>, vector<2x128xf32>
    tpu.vector_store %arg3[%c0_26, %c0_27], %173 {strides = array<i32>} : memref<2x128xf32, #tpu.memory_space<vmem>>, vector<2x128xf32>,
    return
  }
  func.func @transform_0(%arg0: i32) -> (i32, i32) {
    %c0_i32 = arith.constant 0 : i32
    %c0_i32_0 = arith.constant 0 : i32
    %c0_i32_1 = arith.constant 0 : i32
    return %c0_i32, %c0_i32_0 : i32, i32
  }
  func.func @transform_1(%arg0: i32) -> (i32, i32) {
    %c0_i32 = arith.constant 0 : i32
    %c0_i32_0 = arith.constant 0 : i32
    %c0_i32_1 = arith.constant 0 : i32
    return %c0_i32, %c0_i32_0 : i32, i32
  }
  func.func @transform_2(%arg0: i32) -> (i32, i32) {
    %c0_i32 = arith.constant 0 : i32
    %c0_i32_0 = arith.constant 0 : i32
    %c0_i32_1 = arith.constant 0 : i32
    return %c0_i32, %c0_i32_0 : i32, i32
  }
}

</mosaic_0001>

<llo_original>
// kernel: tpu_custom_call.1
$region0: #{tpu_custom_call.1}
  #allocation0 [shape = 'u32[]', space=smem, size = 0x4, offset = 0x4, fixed_abs, tag = 'smem constant byte address 0x4 - core index']
  #allocation1 [shape = 'u32[72,128]{1,0:T(1,128)}', space=vmem, size = 0x9000, scoped, tag = 'internal scratch']
  %s0 = inlined_call_operand.hbm [shape: bf16[176,128], index: 0, kind: input, shape index: {}]
  %s1 = inlined_call_operand.hbm [shape: f32[34,128], index: 1, kind: input, shape index: {}]
  %s2 = inlined_call_operand.hbm [shape: f32[2,128], index: 2, kind: output, shape index: {}]
  %s3 = sld [smem:[#allocation0]]
  $region26: #{tpu_custom_call.1} parent=0
    _
  %s5 = ssub.s32 1, %s3
  %s6 = scalar_select 0, %s5, %s3
  $region1: #{tpu_custom_call.1} parent=0
    #allocation2 [shape = 'u8[45056]{0}', space=vmem, size = 0xb000, scoped, tag = 'input window, operand 0, single buffered']
    #allocation3 [shape = 's32[1]{0}', space=sflag, size = 0x4, scoped, tag = 'scoped memory for tpu_custom_call.1']
    #allocation4 [shape = 's32[1]{0}', space=sflag, size = 0x4, scoped, tag = 'scoped memory for tpu_custom_call.1']
    #allocation5 [shape = 'u8[20480]{0}', space=vmem, size = 0x5000, scoped, tag = 'input window, operand 1, single buffered']
    #allocation6 [shape = 's32[1]{0}', space=sflag, size = 0x4, scoped, tag = 'scoped memory for tpu_custom_call.1']
    #allocation7 [shape = 'u8[1024]{0}', space=vmem, size = 0x400, scoped, tag = 'output window, operand 0, single buffered']
    %7 = vsyncpa [#allocation3], 0
    %8 = vsyncpa [#allocation6], 0
    %9 = vsyncpa [#allocation4], 0
    // Predicated region
    $region2: #{tpu_custom_call.1} parent=1 // pred_check
      _
    $region3: #{tpu_custom_call.1} parent=1 // pred_check_branch
      %11 = sbr.rel (0) target = $region5
    $region4: #{tpu_custom_call.1} parent=1 // pred_region
      %13 = vsyncadd [#allocation3], 0
      %s14 = sshll.u32 %s0, 4
      %s15 = int_to_ptr.hbm [resolvable:$true] %s14
      %s16 = sshll.u32 [#allocation2], 4
      %s17 = int_to_ptr.vmem [resolvable:$true] %s16
      %22 = dma.hbm_to_vmem [thread:$0]  %s15, 1408, %s17, [#allocation3], 64, 64, 4
    $region5: #{tpu_custom_call.1} parent=1 // pred_fallthru
      _
    // Predicated region
    $region6: #{tpu_custom_call.1} parent=1 // pred_check
      _
    $region7: #{tpu_custom_call.1} parent=1 // pred_check_branch
      %24 = sbr.rel (0) target = $region9
    $region8: #{tpu_custom_call.1} parent=1 // pred_region
      %26 = vsyncadd [#allocation6], 0
      %s27 = sshll.u32 %s1, 4
      %s28 = int_to_ptr.hbm [resolvable:$true] %s27
      %s29 = sshll.u32 [#allocation5], 4
      %s30 = int_to_ptr.vmem [resolvable:$true] %s29
      %35 = dma.hbm_to_vmem [thread:$0]  %s28, 640, %s30, [#allocation6], 128, 128, 8
    $region9: #{tpu_custom_call.1} parent=1 // pred_fallthru
      _
    // Predicated region
    $region10: #{tpu_custom_call.1} parent=1 // pred_check
      _
    $region11: #{tpu_custom_call.1} parent=1 // pred_check_branch
      %37 = sbr.rel (0) target = $region13
    $region12: #{tpu_custom_call.1} parent=1 // pred_region
      %39 = dma.done [#allocation3], 1408
    $region13: #{tpu_custom_call.1} parent=1 // pred_fallthru
      _
    // Predicated region
    $region14: #{tpu_custom_call.1} parent=1 // pred_check
      _
    $region15: #{tpu_custom_call.1} parent=1 // pred_check_branch
      %41 = sbr.rel (0) target = $region17
    $region16: #{tpu_custom_call.1} parent=1 // pred_region
      %43 = dma.done [#allocation6], 640
    $region17: #{tpu_custom_call.1} parent=1 // pred_fallthru
      _
    %v45 = vld [vmem:[#allocation2] sm:$0xf]
    %v46 = vld [vmem:[#allocation2 + $0x4] sm:$0xf]
    %v47 = vld [vmem:[#allocation2 + $0x8] sm:$0xf]
    %v48 = vld [vmem:[#allocation2 + $0xc] sm:$0xf]
    %v49 = vld [vmem:[#allocation2 + $0x10] sm:$0xf]
    %v50 = vld [vmem:[#allocation2 + $0x14] sm:$0xf]
    %v51 = vld [vmem:[#allocation2 + $0x18] sm:$0xf]
    %v52 = vld [vmem:[#allocation2 + $0x1c] sm:$0xf]
    %v53 = vld [vmem:[#allocation2 + $0x20] sm:$0xf]
    %v54 = vld [vmem:[#allocation2 + $0x24] sm:$0xf]
    %v55 = vld [vmem:[#allocation2 + $0x28] sm:$0xf]
    %v56 = vld [vmem:[#allocation2 + $0x2c] sm:$0xf]
    %v57 = vld [vmem:[#allocation2 + $0x30] sm:$0xf]
    %v58 = vld [vmem:[#allocation2 + $0x34] sm:$0xf]
    %v59 = vld [vmem:[#allocation2 + $0x38] sm:$0xf]
    %v60 = vld [vmem:[#allocation2 + $0x3c] sm:$0xf]
    %v61 = vld [vmem:[#allocation2 + $0x40] sm:$0xf]
    %v62 = vld [vmem:[#allocation2 + $0x44] sm:$0xf]
    %v63 = vld [vmem:[#allocation2 + $0x48] sm:$0xf]
    %v64 = vld [vmem:[#allocation2 + $0x4c] sm:$0xf]
    %v65 = vld [vmem:[#allocation2 + $0x50] sm:$0xf]
    %v66 = vld [vmem:[#allocation2 + $0x54] sm:$0xf]
    %v67 = vld [vmem:[#allocation5] sm:$0xff]
    %v68 = vld [vmem:[#allocation5 + $0x8] sm:$0xff]
    %v69 = vld [vmem:[#allocation5 + $0x10] sm:$0xff]
    %v70 = vld [vmem:[#allocation5 + $0x18] sm:$0xff]
    %v71 = vld [vmem:[#allocation5 + $0x20] sm:$0x1]
    %v72 = vld [vmem:[#allocation5 + $0x21] sm:$0x1]
    %v73 = vperm.slane %v71, 0
    %v76 = vunpack.c.l.b16 %v45
    %v77 = vunpack.c.l.b16 %v46
    %v78 = vpack.c.b16 %v77, %v76
    %v96 = vunpack.c.l.b16 %v47
    %v97 = vunpack.c.l.b16 %v48
    %v98 = vunpack.c.l.b16 %v49
    %v99 = vunpack.c.l.b16 %v50
    %v100 = vunpack.c.l.b16 %v51
    %v101 = vunpack.c.l.b16 %v52
    %v102 = vunpack.c.l.b16 %v53
    %v103 = vunpack.c.l.b16 %v54
    %v104 = vunpack.c.l.b16 %v55
    %v105 = vunpack.c.l.b16 %v56
    %v106 = vunpack.c.l.b16 %v57
    %v107 = vunpack.c.l.b16 %v58
    %v108 = vunpack.c.l.b16 %v59
    %v109 = vunpack.c.l.b16 %v60
    %v110 = vunpack.c.l.b16 %v61
    %v111 = vunpack.c.l.b16 %v62
    %v112 = vpack.c.b16 %v97, %v96
    %v113 = vpack.c.b16 %v99, %v98
    %v114 = vpack.c.b16 %v101, %v100
    %v115 = vpack.c.b16 %v103, %v102
    %v116 = vpack.c.b16 %v105, %v104
    %v117 = vpack.c.b16 %v107, %v106
    %v118 = vpack.c.b16 %v109, %v108
    %v119 = vpack.c.b16 %v111, %v110
    %128 = vmatpush.bf16.msra.mxu0 %v119
    %129 = vmatpush.bf16.msra.mxu0 %v118
    %130 = vmatpush.bf16.msra.mxu0 %v117
    %131 = vmatpush.bf16.msra.mxu0 %v116
    %132 = vmatpush.bf16.msra.mxu0 %v115
    %133 = vmatpush.bf16.msra.mxu0 %v114
    %134 = vmatpush.bf16.msra.mxu0 %v113
    %135 = vmatpush.bf16.msra.mxu0 %v112
    %136 = vmatmul.bf16.gmra.mxu0 %v78
    %v137 = vpop.f32.mrf.mxu0
    %v138 = vadd.f32 %v73, %v137
    %v139 = vpop.f32.mrf.mxu0
    %v140 = vadd.f32 %v73, %v139
    %141 = vdwg.mxu0
    %v146 = vunpack.c.l.b16 %v63
    %v147 = vunpack.c.l.b16 %v64
    %v148 = vunpack.c.l.b16 %v65
    %v149 = vunpack.c.l.b16 %v66
    %v150 = vpack.c.b16 %v147, %v146
    %v151 = vpack.c.b16 %v149, %v148
    %vm154 = vcmask 261120
    %v156 = vsel %vm154, 0, 0
    %158 = vmatpush.bf16.msra.mxu0 0
    %159 = vmatpush.bf16.msra.mxu0 0
    %160 = vmatpush.bf16.msra.mxu0 0
    %161 = vmatpush.bf16.msra.mxu0 0
    %162 = vmatpush.bf16.msra.mxu0 0
    %163 = vmatpush.bf16.msra.mxu0 0
    %164 = vmatpush.bf16.msra.mxu0 %v151
    %165 = vmatpush.bf16.msra.mxu0 %v150
    %166 = vmatmul.bf16.gmra.mxu0 %v156
    %v167 = vpop.f32.mrf.mxu0
    %v168 = vadd.f32 0.0, %v167
    %v169 = vpop.f32.mrf.mxu0
    %170 = vdwg.mxu0
    %v171 = vadd.f32 %v138, %v168
    %v172 = vxor.u32 %v171, 2147483648
    %v173 = vmul.f32 %v172, 1.442695
    %v174 = vpow.pop %v173
    %v175 = vadd.f32 %v174, 1.0
    %v176 = vrcp.pop %v175
    %v177 = vmul.f32 %v175, %v176
    %v178 = vsub.f32 1.0, %v177
    %v179 = vmul.f32 %v176, %v178
    %v180 = vadd.f32 %v176, %v179
    %vm181 = vweird.f32 %v175
    %vm182 = vweird.f32 %v176
    %vm183 = vmor %vm181, %vm182
    %v184 = vsel %vm183, %v176, %v180
    %v185 = vand.u32 2147483647, %v175
    %vm186 = vcmp.eq.f32.partialorder %v185, 8.507059e+37
    %v187 = vand.u32 %v175, 2147483648
    %v188 = vor.u32 1.1754944e-38, %v187
    %v189 = vsel %vm186, %v188, %v184
    %v190 = vmul.f32 1.0, %v189
    %v191 = vtanh.pop %v171
    %v192 = vmul.f32 %v190, 0.0
    %194 = vrot.lane.b32.xlu0 %v191, 32
    %v195 = vpop.permute.xlu0 %194
    %v197 = vmul.f32 %v190, %v195
    %199 = vrot.lane.b32.xlu0 %v197, 32
    %v200 = vpop.permute.xlu0 %199
    %v202 = vadd.f32 %v192, %v200
    %v203 = vtanh.pop %v202
    %205 = vrot.lane.b32.xlu0 %v203, 32
    %v206 = vpop.permute.xlu0 %205
    %v208 = vmul.f32 %v190, %v206
    %v209 = vpack.c.bf16 %v208, %v208
    %211 = vrot.lane.b32.xlu0 %v209, 64
    %v212 = vpop.permute.xlu0 %211
    %v214 = vsel %vm154, %v212, 0
    %216 = vmatpush.bf16.msra.mxu0 0
    %217 = vmatpush.bf16.msra.mxu0 0
    %218 = vmatpush.bf16.msra.mxu0 0
    %219 = vmatpush.bf16.msra.mxu0 0
    %220 = vmatpush.bf16.msra.mxu0 0
    %221 = vmatpush.bf16.msra.mxu0 0
    %222 = vmatpush.bf16.msra.mxu0 %v151
    %223 = vmatpush.bf16.msra.mxu0 %v150
    %224 = vmatmul.bf16.gmra.mxu0 %v214
    %v225 = vpop.f32.mrf.mxu0
    %v226 = vadd.f32 0.0, %v225
    %v227 = vpop.f32.mrf.mxu0
    %228 = vdwg.mxu0
    %v230 = vrot.slane %v226, 6
    %v232 = vadd.f32 %v138, %v230
    %v233 = vxor.u32 %v232, 2147483648
    %v234 = vmul.f32 %v233, 1.442695
    %v235 = vpow.pop %v234
    %v236 = vadd.f32 %v235, 1.0
    %v237 = vrcp.pop %v236
    %v238 = vmul.f32 %v236, %v237
    %v239 = vsub.f32 1.0, %v238
    %v240 = vmul.f32 %v237, %v239
    %v241 = vadd.f32 %v237, %v240
    %vm242 = vweird.f32 %v236
    %vm243 = vweird.f32 %v237
    %vm244 = vmor %vm242, %vm243
    %v245 = vsel %vm244, %v237, %v241
    %v246 = vand.u32 2147483647, %v236
    %vm247 = vcmp.eq.f32.partialorder %v246, 8.507059e+37
    %v248 = vand.u32 %v236, 2147483648
    %v249 = vor.u32 1.1754944e-38, %v248
    %v250 = vsel %vm247, %v249, %v245
    %v251 = vmul.f32 1.0, %v250
    %v252 = vtanh.pop %v232
    %v254 = vrot.slane %v202, 6
    %v256 = vmul.f32 %v251, %v254
    %258 = vrot.lane.b32.xlu0 %v252, 32
    %v259 = vpop.permute.xlu0 %258
    %v261 = vmul.f32 %v251, %v259
    %263 = vrot.lane.b32.xlu0 %v261, 32
    %v264 = vpop.permute.xlu0 %263
    %v266 = vadd.f32 %v256, %v264
    %v267 = vtanh.pop %v266
    %269 = vrot.lane.b32.xlu0 %v267, 32
    %v270 = vpop.permute.xlu0 %269
    %v272 = vmul.f32 %v251, %v270
    %v273 = vpack.c.bf16 %v272, %v272
    %v275 = vrot.slane %v273, 1
    %276 = vrot.lane.b32.xlu0 %v275, 64
    %v277 = vpop.permute.xlu0 %276
    %v279 = vsel %vm154, %v277, 0
    %281 = vmatpush.bf16.msra.mxu0 0
    %282 = vmatpush.bf16.msra.mxu0 0
    %283 = vmatpush.bf16.msra.mxu0 0
    %284 = vmatpush.bf16.msra.mxu0 0
    %285 = vmatpush.bf16.msra.mxu0 0
    %286 = vmatpush.bf16.msra.mxu0 0
    %287 = vmatpush.bf16.msra.mxu0 %v151
    %288 = vmatpush.bf16.msra.mxu0 %v150
    %289 = vmatmul.bf16.gmra.mxu0 %v279
    %v290 = vpop.f32.mrf.mxu0
    %v291 = vadd.f32 0.0, %v290
    %v292 = vpop.f32.mrf.mxu0
    %293 = vdwg.mxu0
    %v295 = vrot.slane %v291, 4
    %v297 = vadd.f32 %v138, %v295
    %v298 = vxor.u32 %v297, 2147483648
    %v299 = vmul.f32 %v298, 1.442695
    %v300 = vpow.pop %v299
    %v301 = vadd.f32 %v300, 1.0
    %v302 = vrcp.pop %v301
    %v303 = vmul.f32 %v301, %v302
    %v304 = vsub.f32 1.0, %v303
    %v305 = vmul.f32 %v302, %v304
    %v306 = vadd.f32 %v302, %v305
    %vm307 = vweird.f32 %v301
    %vm308 = vweird.f32 %v302
    %vm309 = vmor %vm307, %vm308
    %v310 = vsel %vm309, %v302, %v306
    %v311 = vand.u32 2147483647, %v301
    %vm312 = vcmp.eq.f32.partialorder %v311, 8.507059e+37
    %v313 = vand.u32 %v301, 2147483648
    %v314 = vor.u32 1.1754944e-38, %v313
    %v315 = vsel %vm312, %v314, %v310
    %v316 = vmul.f32 1.0, %v315
    %v317 = vtanh.pop %v297
    %v319 = vrot.slane %v266, 6
    %v321 = vmul.f32 %v316, %v319
    %323 = vrot.lane.b32.xlu0 %v317, 32
    %v324 = vpop.permute.xlu0 %323
    %v326 = vmul.f32 %v316, %v324
    %328 = vrot.lane.b32.xlu0 %v326, 32
    %v329 = vpop.permute.xlu0 %328
    %v331 = vadd.f32 %v321, %v329
    %v332 = vtanh.pop %v331
    %334 = vrot.lane.b32.xlu0 %v332, 32
    %v335 = vpop.permute.xlu0 %334
    %v337 = vmul.f32 %v316, %v335
    %v338 = vpack.c.bf16 %v337, %v337
    %v340 = vrot.slane %v338, 2
    %341 = vrot.lane.b32.xlu0 %v340, 64
    %v342 = vpop.permute.xlu0 %341
    %v344 = vsel %vm154, %v342, 0
    %346 = vmatpush.bf16.msra.mxu0 0
    %347 = vmatpush.bf16.msra.mxu0 0
    %348 = vmatpush.bf16.msra.mxu0 0
    %349 = vmatpush.bf16.msra.mxu0 0
    %350 = vmatpush.bf16.msra.mxu0 0
    %351 = vmatpush.bf16.msra.mxu0 0
    %352 = vmatpush.bf16.msra.mxu0 %v151
    %353 = vmatpush.bf16.msra.mxu0 %v150
    %354 = vmatmul.bf16.gmra.mxu0 %v344
    %v355 = vpop.f32.mrf.mxu0
    %v356 = vadd.f32 0.0, %v355
    %v357 = vpop.f32.mrf.mxu0
    %358 = vdwg.mxu0
    %v360 = vrot.slane %v356, 2
    %v362 = vadd.f32 %v138, %v360
    %v363 = vxor.u32 %v362, 2147483648
    %v364 = vmul.f32 %v363, 1.442695
    %v365 = vpow.pop %v364
    %v366 = vadd.f32 %v365, 1.0
    %v367 = vrcp.pop %v366
    %v368 = vmul.f32 %v366, %v367
    %v369 = vsub.f32 1.0, %v368
    %v370 = vmul.f32 %v367, %v369
    %v371 = vadd.f32 %v367, %v370
    %vm372 = vweird.f32 %v366
    %vm373 = vweird.f32 %v367
    %vm374 = vmor %vm372, %vm373
    %v375 = vsel %vm374, %v367, %v371
    %v376 = vand.u32 2147483647, %v366
    %vm377 = vcmp.eq.f32.partialorder %v376, 8.507059e+37
    %v378 = vand.u32 %v366, 2147483648
    %v379 = vor.u32 1.1754944e-38, %v378
    %v380 = vsel %vm377, %v379, %v375
    %v381 = vmul.f32 1.0, %v380
    %v382 = vtanh.pop %v362
    %v384 = vrot.slane %v331, 6
    %v386 = vmul.f32 %v381, %v384
    %388 = vrot.lane.b32.xlu0 %v382, 32
    %v389 = vpop.permute.xlu0 %388
    %v391 = vmul.f32 %v381, %v389
    %393 = vrot.lane.b32.xlu0 %v391, 32
    %v394 = vpop.permute.xlu0 %393
    %v396 = vadd.f32 %v386, %v394
    %v397 = vtanh.pop %v396
    %399 = vrot.lane.b32.xlu0 %v397, 32
    %v400 = vpop.permute.xlu0 %399
    %v402 = vmul.f32 %v381, %v400
    %v403 = vpack.c.bf16 %v402, %v402
    %v405 = vrot.slane %v403, 3
    %406 = vrot.lane.b32.xlu0 %v405, 64
    %v407 = vpop.permute.xlu0 %406
    %v409 = vsel %vm154, %v407, 0
    %411 = vmatpush.bf16.msra.mxu0 0
    %412 = vmatpush.bf16.msra.mxu0 0
    %413 = vmatpush.bf16.msra.mxu0 0
    %414 = vmatpush.bf16.msra.mxu0 0
    %415 = vmatpush.bf16.msra.mxu0 0
    %416 = vmatpush.bf16.msra.mxu0 0
    %417 = vmatpush.bf16.msra.mxu0 %v151
    %418 = vmatpush.bf16.msra.mxu0 %v150
    %419 = vmatmul.bf16.gmra.mxu0 %v409
    %v420 = vpop.f32.mrf.mxu0
    %v421 = vadd.f32 0.0, %v420
    %v422 = vpop.f32.mrf.mxu0
    %423 = vdwg.mxu0
    %v424 = vadd.f32 %v140, %v421
    %v425 = vxor.u32 %v424, 2147483648
    %v426 = vmul.f32 %v425, 1.442695
    %v427 = vpow.pop %v426
    %v428 = vadd.f32 %v427, 1.0
    %v429 = vrcp.pop %v428
    %v430 = vmul.f32 %v428, %v429
    %v431 = vsub.f32 1.0, %v430
    %v432 = vmul.f32 %v429, %v431
    %v433 = vadd.f32 %v429, %v432
    %vm434 = vweird.f32 %v428
    %vm435 = vweird.f32 %v429
    %vm436 = vmor %vm434, %vm435
    %v437 = vsel %vm436, %v429, %v433
    %v438 = vand.u32 2147483647, %v428
    %vm439 = vcmp.eq.f32.partialorder %v438, 8.507059e+37
    %v440 = vand.u32 %v428, 2147483648
    %v441 = vor.u32 1.1754944e-38, %v440
    %v442 = vsel %vm439, %v441, %v437
    %v443 = vmul.f32 1.0, %v442
    %v444 = vtanh.pop %v424
    %v446 = vrot.slane %v396, 6
    %v448 = vmul.f32 %v443, %v446
    %450 = vrot.lane.b32.xlu0 %v444, 32
    %v451 = vpop.permute.xlu0 %450
    %v453 = vmul.f32 %v443, %v451
    %455 = vrot.lane.b32.xlu0 %v453, 32
    %v456 = vpop.permute.xlu0 %455
    %v458 = vadd.f32 %v448, %v456
    %v459 = vtanh.pop %v458
    %461 = vrot.lane.b32.xlu0 %v459, 32
    %v462 = vpop.permute.xlu0 %461
    %v464 = vmul.f32 %v443, %v462
    %v465 = vpack.c.bf16 %v464, %v464
    %467 = vrot.lane.b32.xlu0 %v465, 64
    %v468 = vpop.permute.xlu0 %467
    %v470 = vsel %vm154, %v468, 0
    %472 = vmatpush.bf16.msra.mxu0 0
    %473 = vmatpush.bf16.msra.mxu0 0
    %474 = vmatpush.bf16.msra.mxu0 0
    %475 = vmatpush.bf16.msra.mxu0 0
    %476 = vmatpush.bf16.msra.mxu0 0
    %477 = vmatpush.bf16.msra.mxu0 0
    %478 = vmatpush.bf16.msra.mxu0 %v151
    %479 = vmatpush.bf16.msra.mxu0 %v150
    %480 = vmatmul.bf16.gmra.mxu0 %v470
    %v481 = vpop.f32.mrf.mxu0
    %v482 = vadd.f32 0.0, %v481
    %v483 = vpop.f32.mrf.mxu0
    %484 = vdwg.mxu0
    %v486 = vrot.slane %v482, 6
    %v488 = vadd.f32 %v140, %v486
    %v489 = vxor.u32 %v488, 2147483648
    %v490 = vmul.f32 %v489, 1.442695
    %v491 = vpow.pop %v490
    %v492 = vadd.f32 %v491, 1.0
    %v493 = vrcp.pop %v492
    %v494 = vmul.f32 %v492, %v493
    %v495 = vsub.f32 1.0, %v494
    %v496 = vmul.f32 %v493, %v495
    %v497 = vadd.f32 %v493, %v496
    %vm498 = vweird.f32 %v492
    %vm499 = vweird.f32 %v493
    %vm500 = vmor %vm498, %vm499
    %v501 = vsel %vm500, %v493, %v497
    %v502 = vand.u32 2147483647, %v492
    %vm503 = vcmp.eq.f32.partialorder %v502, 8.507059e+37
    %v504 = vand.u32 %v492, 2147483648
    %v505 = vor.u32 1.1754944e-38, %v504
    %v506 = vsel %vm503, %v505, %v501
    %v507 = vmul.f32 1.0, %v506
    %v508 = vtanh.pop %v488
    %v510 = vrot.slane %v458, 6
    %v512 = vmul.f32 %v507, %v510
    %514 = vrot.lane.b32.xlu0 %v508, 32
    %v515 = vpop.permute.xlu0 %514
    %v517 = vmul.f32 %v507, %v515
    %519 = vrot.lane.b32.xlu0 %v517, 32
    %v520 = vpop.permute.xlu0 %519
    %v522 = vadd.f32 %v512, %v520
    %v523 = vtanh.pop %v522
    %525 = vrot.lane.b32.xlu0 %v523, 32
    %v526 = vpop.permute.xlu0 %525
    %v528 = vmul.f32 %v507, %v526
    %v529 = vpack.c.bf16 %v528, %v528
    %v531 = vrot.slane %v529, 1
    %532 = vrot.lane.b32.xlu0 %v531, 64
    %v533 = vpop.permute.xlu0 %532
    %v535 = vsel %vm154, %v533, 0
    %537 = vmatpush.bf16.msra.mxu0 0
    %538 = vmatpush.bf16.msra.mxu0 0
    %539 = vmatpush.bf16.msra.mxu0 0
    %540 = vmatpush.bf16.msra.mxu0 0
    %541 = vmatpush.bf16.msra.mxu0 0
    %542 = vmatpush.bf16.msra.mxu0 0
    %543 = vmatpush.bf16.msra.mxu0 %v151
    %544 = vmatpush.bf16.msra.mxu0 %v150
    %545 = vmatmul.bf16.gmra.mxu0 %v535
    %v546 = vpop.f32.mrf.mxu0
    %v547 = vadd.f32 0.0, %v546
    %v548 = vpop.f32.mrf.mxu0
    %549 = vdwg.mxu0
    %v551 = vrot.slane %v547, 4
    %v553 = vadd.f32 %v140, %v551
    %v554 = vxor.u32 %v553, 2147483648
    %v555 = vmul.f32 %v554, 1.442695
    %v556 = vpow.pop %v555
    %v557 = vadd.f32 %v556, 1.0
    %v558 = vrcp.pop %v557
    %v559 = vmul.f32 %v557, %v558
    %v560 = vsub.f32 1.0, %v559
    %v561 = vmul.f32 %v558, %v560
    %v562 = vadd.f32 %v558, %v561
    %vm563 = vweird.f32 %v557
    %vm564 = vweird.f32 %v558
    %vm565 = vmor %vm563, %vm564
    %v566 = vsel %vm565, %v558, %v562
    %v567 = vand.u32 2147483647, %v557
    %vm568 = vcmp.eq.f32.partialorder %v567, 8.507059e+37
    %v569 = vand.u32 %v557, 2147483648
    %v570 = vor.u32 1.1754944e-38, %v569
    %v571 = vsel %vm568, %v570, %v566
    %v572 = vmul.f32 1.0, %v571
    %v573 = vtanh.pop %v553
    %v575 = vrot.slane %v522, 6
    %v577 = vmul.f32 %v572, %v575
    %579 = vrot.lane.b32.xlu0 %v573, 32
    %v580 = vpop.permute.xlu0 %579
    %v582 = vmul.f32 %v572, %v580
    %584 = vrot.lane.b32.xlu0 %v582, 32
    %v585 = vpop.permute.xlu0 %584
    %v587 = vadd.f32 %v577, %v585
    %v588 = vtanh.pop %v587
    %590 = vrot.lane.b32.xlu0 %v588, 32
    %v591 = vpop.permute.xlu0 %590
    %v593 = vmul.f32 %v572, %v591
    %v594 = vpack.c.bf16 %v593, %v593
    %v596 = vrot.slane %v594, 2
    %597 = vrot.lane.b32.xlu0 %v596, 64
    %v598 = vpop.permute.xlu0 %597
    %v600 = vsel %vm154, %v598, 0
    %602 = vmatpush.bf16.msra.mxu0 0
    %603 = vmatpush.bf16.msra.mxu0 0
    %604 = vmatpush.bf16.msra.mxu0 0
    %605 = vmatpush.bf16.msra.mxu0 0
    %606 = vmatpush.bf16.msra.mxu0 0
    %607 = vmatpush.bf16.msra.mxu0 0
    %608 = vmatpush.bf16.msra.mxu0 %v151
    %609 = vmatpush.bf16.msra.mxu0 %v150
    %610 = vmatmul.bf16.gmra.mxu0 %v600
    %v611 = vpop.f32.mrf.mxu0
    %v612 = vadd.f32 0.0, %v611
    %v613 = vpop.f32.mrf.mxu0
    %614 = vdwg.mxu0
    %v616 = vrot.slane %v612, 2
    %v618 = vadd.f32 %v140, %v616
    %v619 = vxor.u32 %v618, 2147483648
    %v620 = vmul.f32 %v619, 1.442695
    %v621 = vpow.pop %v620
    %v622 = vadd.f32 %v621, 1.0
    %v623 = vrcp.pop %v622
    %v624 = vmul.f32 %v622, %v623
    %v625 = vsub.f32 1.0, %v624
    %v626 = vmul.f32 %v623, %v625
    %v627 = vadd.f32 %v623, %v626
    %vm628 = vweird.f32 %v622
    %vm629 = vweird.f32 %v623
    %vm630 = vmor %vm628, %vm629
    %v631 = vsel %vm630, %v623, %v627
    %v632 = vand.u32 2147483647, %v622
    %vm633 = vcmp.eq.f32.partialorder %v632, 8.507059e+37
    %v634 = vand.u32 %v622, 2147483648
    %v635 = vor.u32 1.1754944e-38, %v634
    %v636 = vsel %vm633, %v635, %v631
    %v637 = vmul.f32 1.0, %v636
    %v638 = vtanh.pop %v618
    %v640 = vrot.slane %v587, 6
    %v642 = vmul.f32 %v637, %v640
    %644 = vrot.lane.b32.xlu0 %v638, 32
    %v645 = vpop.permute.xlu0 %644
    %v647 = vmul.f32 %v637, %v645
    %649 = vrot.lane.b32.xlu0 %v647, 32
    %v650 = vpop.permute.xlu0 %649
    %v652 = vadd.f32 %v642, %v650
    %v653 = vtanh.pop %v652
    %655 = vrot.lane.b32.xlu0 %v653, 32
    %v656 = vpop.permute.xlu0 %655
    %v658 = vmul.f32 %v637, %v656
    %v659 = vperm.slane %v72, 0
    %v661 = vrot.slane %v658, 6
    %662 = vrot.lane.b32.xlu0 %v661, 64
    %v663 = vpop.permute.xlu0 %662
    %v664 = vsel %vm154, %v663, 0
    %666 = vmatpush.msra.mxu0 0.0
    %667 = vmatpush.msra.mxu0 0.0
    %668 = vmatpush.msra.mxu0 0.0
    %669 = vmatpush.msra.mxu0 0.0
    %670 = vmatpush.msra.mxu0 0.0
    %671 = vmatpush.msra.mxu0 0.0
    %672 = vmatpush.msra.mxu0 0.0
    %673 = vmatpush.msra.mxu0 0.0
    %674 = vmatpush.msra.mxu0 0.0
    %675 = vmatpush.msra.mxu0 0.0
    %676 = vmatpush.msra.mxu0 0.0
    %677 = vmatpush.msra.mxu0 0.0
    %678 = vmatpush.msra.mxu0 %v70
    %679 = vmatpush.msra.mxu0 %v69
    %680 = vmatpush.msra.mxu0 %v68
    %681 = vmatpush.msra.mxu0 %v67
    %682 = vmatmul.f32.gmra.mxu0 %v664
    %v683 = vpop.f32.mrf.mxu0
    %v684 = vadd.f32 %v659, %v683
    %685 = vdwg.mxu0
    %686 = vst [vmem:[#allocation7] sm:$0x3] %v684
    // Predicated region
    $region18: #{tpu_custom_call.1} parent=1 // pred_check
      _
    $region19: #{tpu_custom_call.1} parent=1 // pred_check_branch
      %688 = sbr.rel (0) target = $region21
    $region20: #{tpu_custom_call.1} parent=1 // pred_region
      %690 = vsyncadd [#allocation4], 0
      %s692 = sshll.u32 [#allocation7], 4
      %s693 = int_to_ptr.vmem [resolvable:$true] %s692
      %s694 = sshll.u32 %s2, 4
      %s695 = int_to_ptr.hbm [resolvable:$true] %s694
      %697 = dma.vmem_to_hbm [thread:$0]  %s693, 32, %s695, [#allocation4]
    $region21: #{tpu_custom_call.1} parent=1 // pred_fallthru
      _
    // Predicated region
    $region22: #{tpu_custom_call.1} parent=1 // pred_check
      _
    $region23: #{tpu_custom_call.1} parent=1 // pred_check_branch
      %699 = sbr.rel (0) target = $region25
    $region24: #{tpu_custom_call.1} parent=1 // pred_region
      %701 = dma.done [#allocation4], 32
    $region25: #{tpu_custom_call.1} parent=1 // pred_fallthru
      _
    %702 = vsyncpa [#allocation3], 1
    %703 = vsyncpa [#allocation6], 1
    %704 = vsyncpa [#allocation4], 1

</llo_original>
